<compile_context>
chip_gen: v7x
topology: tpu7x:2x2x1
jax: 0.10.0
libtpu: 0.0.40
codegen_flags: <defaults>
</compile_context>

<pallas_src>
import functools

import jax
import jax.numpy as jnp
from jax import lax
from jax.experimental import pallas as pl
from jax.experimental.pallas import tpu as pltpu


def _label_smoothing_kernel(logits_ref, targets_ref, partial_ref, *,
                            confidence, smooth_value, batch, block_rows):
    x = logits_ref[...]                       # (TB, C) native dtype, no upfront upcast
    tgt = targets_ref[...]                    # (TB, 1) int32
    tb, c = x.shape

    # ---- pass 1: row max + single weighted reduce over the native tile ----
    m = jnp.max(x, axis=-1, keepdims=True).astype(jnp.float32)        # (TB, 1)
    col = lax.broadcasted_iota(jnp.int32, (tb, c), 1)
    w = jnp.where(col == tgt,
                  jnp.float32(confidence + smooth_value),
                  jnp.float32(smooth_value))                          # (TB, C)
    weighted = jnp.sum(w * x.astype(jnp.float32),
                       axis=-1, keepdims=True)                        # (TB, 1)

    # ---- pass 2: logsumexp tail (cast per-vreg again; no shared f32 slab) ----
    lse = jnp.log(jnp.sum(jnp.exp(x.astype(jnp.float32) - m),
                          axis=-1, keepdims=True))                    # (TB, 1)

    # Smoothed weights sum to confidence + C*smooth_value over the FULL class
    # axis C (NOT `classes`), matching the PyTorch reference exactly.
    weight_sum = jnp.float32(confidence + float(c) * smooth_value)
    per_row = weight_sum * (m + lse) - weighted                       # (TB, 1)

    # Mask padded rows of a ragged last tile (raw sum only; true-B mean is
    # applied once in the JAX epilogue).
    row0 = pl.program_id(0) * block_rows
    row_ids = row0 + lax.broadcasted_iota(jnp.int32, (tb, 1), 0)
    per_row = jnp.where(row_ids < batch, per_row, 0.0)

    # Lane-dense partial: broadcast the block sum across 128 lanes so the
    # store is an unmasked vst (epilogue reads lane 0 only).
    block_sum = jnp.sum(per_row, axis=0, keepdims=True)               # (1, 1)
    partial_ref[...] = jnp.broadcast_to(block_sum, (1, 128)).reshape(1, 1, 128)


def _vmem_capacity_bytes():
    """Generation-aware VMEM capacity; conservative v7x floor as fallback."""
    try:
        cap = getattr(pltpu.get_tpu_info(), "vmem_capacity_bytes", None)
        if cap:
            return int(cap)
    except Exception:
        pass
    return 64 * 1024 * 1024


def _choose_block_rows(batch, num_classes, itemsize):
    """Pick the row-tile size by bytes, not a fixed row cap.

    Working set per tile row ~= 2 * C * itemsize (double-buffered native
    input) + 2 * C * 4 (f32 intermediates after the pass fusion).  Target
    ~1/3 of physical VMEM, allow up to 2048 rows, keep rows a multiple of 8
    (16 for packed 2-byte dtypes), and split the batch into >= 2 blocks when
    possible so v7x's two TensorCores both get work.
    """
    align = 8 if itemsize >= 4 else 16
    if batch < 2 * align:
        return batch                       # block == full dim, always legal

    budget = _vmem_capacity_bytes() // 3
    bytes_per_row = num_classes * (2 * itemsize + 2 * 4)
    max_rows = max(align, budget // bytes_per_row)

    half = -(-batch // 2)                  # ceil(batch / 2) -> >= 2 grid blocks
    tb = min(2048, max_rows, half)
    return max(align, (tb // align) * align)


def label_smoothing_loss(logits, targets, classes=None, smoothing=0.1,
                         block_rows=None):
    """logits: (B, C) float32/bfloat16, targets: (B,) int."""
    B, C = logits.shape
    classes = C if classes is None else classes
    confidence = 1.0 - smoothing
    smooth_value = smoothing / classes

    itemsize = jnp.dtype(logits.dtype).itemsize
    tb = block_rows if block_rows is not None else _choose_block_rows(
        B, C, itemsize)
    num_blocks = pl.cdiv(B, tb)

    targets_2d = targets.astype(jnp.int32).reshape(B, 1)

    # Generation-aware VMEM limit derived from the real working set.
    vmem_cap = _vmem_capacity_bytes()
    c_pad = ((C + 127) // 128) * 128
    working = tb * c_pad * (2 * itemsize + 3 * 4) + (1 << 20)
    vmem_limit = int(min(vmem_cap - (8 << 20),
                         max(2 * working, 32 << 20)))

    kernel = functools.partial(
        _label_smoothing_kernel,
        confidence=confidence,
        smooth_value=smooth_value,
        batch=B,
        block_rows=tb,
    )

    cost = pl.CostEstimate(
        flops=6 * B * C,
        transcendentals=B * C,
        bytes_accessed=B * C * itemsize + B * 4 + num_blocks * 128 * 4,
    )

    partials = pl.pallas_call(
        kernel,
        grid=(num_blocks,),
        out_shape=jax.ShapeDtypeStruct((num_blocks, 1, 128), jnp.float32),
        in_specs=[
            pl.BlockSpec((tb, C), lambda i: (i, 0)),   # lane-dense logits tile
            pl.BlockSpec((tb, 1), lambda i: (i, 0)),   # matching target rows
        ],
        out_specs=pl.BlockSpec((1, 1, 128), lambda i: (i, 0, 0)),
        compiler_params=pltpu.CompilerParams(
            dimension_semantics=("parallel",),
            vmem_limit_bytes=vmem_limit,
        ),
        cost_estimate=cost,
    )(logits, targets_2d)

    # Tiny epilogue: sum per-block partials (lane 0) and apply the true-B mean.
    return jnp.sum(partials[:, 0, 0]) / jnp.float32(B)


def _reference(logits, targets, classes, smoothing=0.1):
    logits = logits.astype(jnp.float32)
    confidence = 1.0 - smoothing
    smooth_value = smoothing / classes
    one_hot = jax.nn.one_hot(targets, logits.shape[1], dtype=logits.dtype)
    smoothed = one_hot * confidence + smooth_value
    logp = jax.nn.log_softmax(logits, axis=-1)
    return jnp.mean(jnp.sum(-smoothed * logp, axis=1))


if __name__ == "__main__":
    key = jax.random.PRNGKey(0)
    k1, k2 = jax.random.split(key)

    B, C = 10, 128
    logits = jax.random.normal(k1, (B, C), dtype=jnp.float32)
    targets = jax.random.randint(k2, (B,), 0, C, dtype=jnp.int32)

    # 1) f32, single full-batch tile.
    loss = label_smoothing_loss(logits, targets, classes=C, smoothing=0.1)
    jax.block_until_ready(loss)
    ref = _reference(logits, targets, classes=C, smoothing=0.1)
    assert jnp.allclose(loss, ref, rtol=1e-5, atol=1e-5), (loss, ref)

    # 2) bf16 streamed natively (upcast happens inside the kernel).
    logits_bf16 = logits.astype(jnp.bfloat16)
    loss_bf = label_smoothing_loss(logits_bf16, targets, classes=C, smoothing=0.1)
    jax.block_until_ready(loss_bf)
    ref_bf = _reference(logits_bf16, targets, classes=C, smoothing=0.1)
    assert jnp.allclose(loss_bf, ref_bf, rtol=1e-4, atol=1e-4), (loss_bf, ref_bf)

    # 3) Ragged last tile: force 8-row blocks over B=10 (exercises row masking).
    loss_r = label_smoothing_loss(logits, targets, classes=C, smoothing=0.1,
                                  block_rows=8)
    jax.block_until_ready(loss_r)
    assert jnp.allclose(loss_r, ref, rtol=1e-5, atol=1e-5), (loss_r, ref)

    # 4) Class width not a multiple of 128 (lane padding) and classes != C.
    C2 = 100
    logits2 = jax.random.normal(k1, (B, C2), dtype=jnp.float32)
    targets2 = jax.random.randint(k2, (B,), 0, C2, dtype=jnp.int32)
    loss2 = label_smoothing_loss(logits2, targets2, classes=256, smoothing=0.1)
    jax.block_until_ready(loss2)
    ref2 = _reference(logits2, targets2, classes=256, smoothing=0.1)
    assert jnp.allclose(loss2, ref2, rtol=1e-5, atol=1e-5), (loss2, ref2)

    print("KERNEL_OK")
</pallas_src>

<mosaic_0001>
module attributes {stable_mosaic.version = 11 : i64} {
  func.func @_label_smoothing_kernel(%arg0: i32, %arg1: memref<10x128xf32, #tpu.memory_space<vmem>>, %arg2: memref<10x1xi32, #tpu.memory_space<vmem>>, %arg3: memref<1x1x128xf32, #tpu.memory_space<vmem>>) attributes {dimension_semantics = [#tpu.dimension_semantics<parallel>], iteration_bounds = array<i64: 1>, scalar_prefetch = 0 : i64, scratch_operands = 0 : i64, tpu.core_type = #tpu.core_type<tc>, window_params = [{transform_indices = @transform_0, window_bounds = array<i64: 10, 128>}, {transform_indices = @transform_1, window_bounds = array<i64: 10, 1>}, {transform_indices = @transform_2, window_bounds = array<i64: 1, 1, 128>}]} {
    %c0 = arith.constant 0 : index
    %c0_0 = arith.constant 0 : index
    %0 = vector.load %arg1[%c0, %c0_0] : memref<10x128xf32, #tpu.memory_space<vmem>>, vector<10x128xf32>
    %c0_1 = arith.constant 0 : index
    %c0_2 = arith.constant 0 : index
    %1 = vector.load %arg2[%c0_1, %c0_2] : memref<10x1xi32, #tpu.memory_space<vmem>>, vector<10x1xi32>
    %cst = arith.constant dense<0xFF800000> : vector<10xf32>
    %2 = vector.multi_reduction <maximumf>, %0, %cst [1] : vector<10x128xf32> to vector<10xf32>
    %3 = vector.shape_cast %2 : vector<10xf32> to vector<10x1xf32>
    %4 = tpu.iota {dimensions = array<i32: 1>} : vector<10x128xi32>
    %5 = vector.broadcast %1 : vector<10x1xi32> to vector<10x128xi32>
    %6 = arith.cmpi eq, %4, %5 : vector<10x128xi32>
    %cst_3 = arith.constant 0.900781273 : f32
    %cst_4 = arith.constant 7.812500e-04 : f32
    %7 = vector.broadcast %cst_3 : f32 to vector<10x128xf32>
    %8 = vector.broadcast %cst_4 : f32 to vector<10x128xf32>
    %9 = arith.select %6, %7, %8 : vector<10x128xi1>, vector<10x128xf32>
    %10 = arith.mulf %9, %0 : vector<10x128xf32>
    %cst_5 = arith.constant dense<0.000000e+00> : vector<10xf32>
    %11 = vector.multi_reduction <add>, %10, %cst_5 [1] : vector<10x128xf32> to vector<10xf32>
    %12 = vector.shape_cast %11 : vector<10xf32> to vector<10x1xf32>
    %13 = vector.broadcast %3 : vector<10x1xf32> to vector<10x128xf32>
    %14 = arith.subf %0, %13 : vector<10x128xf32>
    %15 = math.exp %14 : vector<10x128xf32>
    %cst_6 = arith.constant dense<0.000000e+00> : vector<10xf32>
    %16 = vector.multi_reduction <add>, %15, %cst_6 [1] : vector<10x128xf32> to vector<10xf32>
    %17 = vector.shape_cast %16 : vector<10xf32> to vector<10x1xf32>
    %18 = math.log %17 : vector<10x1xf32>
    %19 = arith.addf %3, %18 : vector<10x1xf32>
    %cst_7 = arith.constant 1.000000e+00 : f32
    %20 = vector.broadcast %cst_7 : f32 to vector<10x1xf32>
    %21 = arith.mulf %20, %19 : vector<10x1xf32>
    %22 = arith.subf %21, %12 : vector<10x1xf32>
    %c10_i32 = arith.constant 10 : i32
    %23 = arith.muli %arg0, %c10_i32 : i32
    %24 = tpu.iota {dimensions = array<i32: 0>} : vector<10x1xi32>
    %25 = vector.broadcast %23 : i32 to vector<10x1xi32>
    %26 = arith.addi %25, %24 : vector<10x1xi32>
    %c10_i32_8 = arith.constant 10 : i32
    %27 = vector.broadcast %c10_i32_8 : i32 to vector<10x1xi32>
    %28 = arith.cmpi slt, %26, %27 : vector<10x1xi32>
    %cst_9 = arith.constant 0.000000e+00 : f32
    %29 = vector.broadcast %cst_9 : f32 to vector<10x1xf32>
    %30 = arith.select %28, %22, %29 : vector<10x1xi1>, vector<10x1xf32>
    %cst_10 = arith.constant dense<0.000000e+00> : vector<1xf32>
    %31 = vector.multi_reduction <add>, %30, %cst_10 [0] : vector<10x1xf32> to vector<1xf32>
    %32 = vector.shape_cast %31 : vector<1xf32> to vector<1x1xf32>
    %33 = vector.shape_cast %32 : vector<1x1xf32> to vector<1x1xf32>
    %34 = vector.broadcast %33 : vector<1x1xf32> to vector<1x128xf32>
    %35 = vector.shape_cast %34 : vector<1x128xf32> to vector<1x1x128xf32>
    %c0_11 = arith.constant 0 : index
    %c0_12 = arith.constant 0 : index
    %c0_13 = arith.constant 0 : index
    %36 = vector.load %arg3[%c0_11, %c0_12, %c0_13] : memref<1x1x128xf32, #tpu.memory_space<vmem>>, vector<1x1x128xf32>
    tpu.vector_store %arg3[%c0_11, %c0_12, %c0_13], %35 {strides = array<i32>} : memref<1x1x128xf32, #tpu.memory_space<vmem>>, vector<1x1x128xf32>,
    return
  }
  func.func @transform_0(%arg0: i32) -> (i32, i32) {
    %c0_i32 = arith.constant 0 : i32
    %c0_i32_0 = arith.constant 0 : i32
    return %arg0, %c0_i32 : i32, i32
  }
  func.func @transform_1(%arg0: i32) -> (i32, i32) {
    %c0_i32 = arith.constant 0 : i32
    %c0_i32_0 = arith.constant 0 : i32
    return %arg0, %c0_i32 : i32, i32
  }
  func.func @transform_2(%arg0: i32) -> (i32, i32, i32) {
    %c0_i32 = arith.constant 0 : i32
    %c0_i32_0 = arith.constant 0 : i32
    %c0_i32_1 = arith.constant 0 : i32
    return %arg0, %c0_i32, %c0_i32_0 : i32, i32, i32
  }
}

</mosaic_0001>

<llo_original>
// kernel: tpu_custom_call.1
$region0: #{tpu_custom_call.1}
  #allocation0 [shape = 'u32[]', space=smem, size = 0x4, offset = 0x4, fixed_abs, tag = 'smem constant byte address 0x4 - core index']
  #allocation1 [shape = 'u32[144,128]{1,0:T(1,128)}', space=vmem, size = 0x12000, scoped, tag = 'internal scratch']
  %s0 = inlined_call_operand.vmem [shape: f32[10,128], index: 0, kind: input, shape index: {}]
  %s1 = inlined_call_operand.vmem [shape: s32[10,1], index: 1, kind: input, shape index: {}]
  %s2 = inlined_call_operand.hbm [shape: f32[1,1,128], index: 2, kind: output, shape index: {}]
  %s3 = sld [smem:[#allocation0]]
  $region18: #{tpu_custom_call.1} parent=0
    _
  %s5 = ssub.s32 1, %s3
  %s6 = scalar_select 0, %s5, %s3
  $region1: #{tpu_custom_call.1} parent=0
    #allocation2 [shape = 'u8[512]{0}', space=vmem, size = 0x400, scoped, tag = 'output window, operand 0, single buffered']
    #allocation3 [shape = 's32[1]{0}', space=sflag, size = 0x4, scoped, tag = 'scoped memory for tpu_custom_call.1']
    %7 = vsyncpa [#allocation3], 0
    // Predicated region
    $region2: #{tpu_custom_call.1} parent=1 // pred_check
      _
    $region3: #{tpu_custom_call.1} parent=1 // pred_check_branch
      %9 = sbr.rel (0) target = $region5
    $region4: #{tpu_custom_call.1} parent=1 // pred_region
      _
    $region5: #{tpu_custom_call.1} parent=1 // pred_fallthru
      _
    // Predicated region
    $region6: #{tpu_custom_call.1} parent=1 // pred_check
      _
    $region7: #{tpu_custom_call.1} parent=1 // pred_check_branch
      %11 = sbr.rel (0) target = $region9
    $region8: #{tpu_custom_call.1} parent=1 // pred_region
      _
    $region9: #{tpu_custom_call.1} parent=1 // pred_fallthru
      _
    %v12 = vld [vmem:[%s0] sm:$0xff]
    %v13 = vld [vmem:[%s0 + $0x8] sm:$0x3]
    %v14 = vld [vmem:[%s1] sm:$0xff]
    %v15 = vld [vmem:[%s1 + $0x8] sm:$0x3]
    %16 = vmax.xlane.f32.xlu0 %v12
    %v17 = vpop.xlane.xlu0 %16
    %vm18 = vcmask 1041408
    %v19 = vsel %vm18, %v13, -inf
    %20 = vmax.xlane.f32.xlu0 %v19
    %v21 = vpop.xlane.xlu0 %20
    %v22 = vlaneseq
    %v23 = vand.u32 %v22, 127
    %24 = vset.pattern.permute.xlu0 0
    %25 = vperm.xlu0 %24, %v14
    %v26 = vpop.permute.xlu0 %25
    %27 = vset.pattern.permute.xlu0 0
    %28 = vperm.xlu0 %27, %v15
    %v29 = vpop.permute.xlu0 %28
    %vm30 = vcmp.eq.s32.totalorder %v23, %v26
    %vm31 = vcmp.eq.s32.totalorder %v23, %v29
    %v32 = vsel %vm30, 0.9007813, 0.00078125
    %v33 = vsel %vm31, 0.9007813, 0.00078125
    %v34 = vmul.f32 %v32, %v12
    %v35 = vmul.f32 %v33, %v13
    %36 = vadd.xlane.f32.xlu0 %v34
    %v37 = vpop.xlane.xlu0 %36
    %v38 = vsel %vm18, %v35, 0.0
    %39 = vadd.xlane.f32.xlu0 %v38
    %v40 = vpop.xlane.xlu0 %39
    %v41 = vsub.f32 %v12, %v17
    %v42 = vsub.f32 %v13, %v21
    %v43 = vmul.f32 %v41, 1.442695
    %v44 = vpow.pop %v43
    %v45 = vmul.f32 %v42, 1.442695
    %v46 = vpow.pop %v45
    %47 = vadd.xlane.f32.xlu0 %v44
    %v48 = vpop.xlane.xlu0 %47
    %v49 = vsel %vm18, %v46, 0.0
    %50 = vadd.xlane.f32.xlu0 %v49
    %v51 = vpop.xlane.xlu0 %50
    %v52 = vlog2.pop %v48
    %v53 = vmul.f32 %v52, 0.6931472
    %v54 = vlog2.pop %v51
    %v55 = vmul.f32 %v54, 0.6931472
    %v56 = vadd.f32 %v17, %v53
    %v57 = vadd.f32 %v21, %v55
    %v58 = vsub.f32 %v56, %v37
    %v59 = vsub.f32 %v57, %v40
    %s60 = smul.u32 0, 10
    %v61 = vlaneseq
    %v62 = vshrl.u32 %v61, 7
    %v63 = vadd.s32 %v62, 8
    %v64 = vstv %s60
    %v65 = vadd.s32 %v64, %v62
    %v66 = vadd.s32 %v64, %v63
    %vm67 = vcmp.lt.s32.totalorder %v65, 10
    %vm68 = vcmp.lt.s32.totalorder %v66, 10
    %v69 = vsel %vm67, %v58, 0.0
    %v70 = vsel %vm68, %v59, 0.0
    %v71 = vsel %vm18, %v70, 0.0
    %v72 = vadd.f32 %v69, %v71
    %v73 = vrot.slane %v72, 4
    %v74 = vadd.f32 %v72, %v73
    %v75 = vrot.slane %v74, 2
    %v76 = vadd.f32 %v74, %v75
    %v77 = vrot.slane %v76, 1
    %v78 = vadd.f32 %v76, %v77
    %79 = vst [vmem:[#allocation2] sm:$0x1] %v78
    // Predicated region
    $region10: #{tpu_custom_call.1} parent=1 // pred_check
      _
    $region11: #{tpu_custom_call.1} parent=1 // pred_check_branch
      %81 = sbr.rel (0) target = $region13
    $region12: #{tpu_custom_call.1} parent=1 // pred_region
      %s83 = ssub.s32 16, 16
      %84 = vsyncadd [#allocation3], %s83
      %s86 = sshll.u32 [#allocation2], 4
      %s87 = int_to_ptr.vmem [resolvable:$true] %s86
      %89 = dma.vmem_to_hbm [thread:$0]  %s87, 16, %s2, [#allocation3]
    $region13: #{tpu_custom_call.1} parent=1 // pred_fallthru
      _
    // Predicated region
    $region14: #{tpu_custom_call.1} parent=1 // pred_check
      _
    $region15: #{tpu_custom_call.1} parent=1 // pred_check_branch
      %91 = sbr.rel (0) target = $region17
    $region16: #{tpu_custom_call.1} parent=1 // pred_region
      %92 = dma.done [#allocation3], 16
    $region17: #{tpu_custom_call.1} parent=1 // pred_fallthru
      _
    %93 = vsyncpa [#allocation3], 1

</llo_original>
